<compile_context>
chip_gen: v7x
topology: tpu7x:2x2x1
jax: 0.10.0
libtpu: 0.0.40
codegen_flags: <defaults>
</compile_context>

<pallas_src>
import jax
import jax.numpy as jnp
from jax.experimental import pallas as pl
from jax.experimental.pallas import tpu as pltpu


def _round_up(x, m):
    return ((x + m - 1) // m) * m


def policy_kernel(x_ref, w1_ref, b1_ref, w2_ref, b2_ref, w3_ref, b3_ref,
                  out_ref):
    # x_ref: (dim_state, TB) transposed batch tile (lane dim = batch).
    x = x_ref[...]                                   # (S, TB) f32
    w1 = w1_ref[...]                                 # (32, S) f32

    # Layer 1 on the VPU: K = dim_state is tiny; 3 outer-product MACs.
    acc = w1[:, 0:1] * x[0:1, :]                     # (32, TB)
    for k in range(1, w1.shape[1]):                  # static, small
        acc = acc + w1[:, k:k + 1] * x[k:k + 1, :]
    h1 = jnp.maximum(acc + b1_ref[...], 0.0)         # (32, TB)

    # Layer 2 on the MXU: (128, 32) @ (32, TB) -> (128, TB), f32 accumulate.
    h2 = jnp.dot(w2_ref[...], h1, preferred_element_type=jnp.float32)
    h2 = jnp.maximum(h2 + b2_ref[...], 0.0)

    # Layer 3 (narrow tail) on the MXU: (N_pad=8, 128) @ (128, TB) -> (8, TB).
    # Store is lane-dense over TB and only 8 sublanes wide.
    h3 = jnp.dot(w3_ref[...], h2, preferred_element_type=jnp.float32)
    out_ref[...] = jnp.tanh(h3 + b3_ref[...]).astype(out_ref.dtype)


def policy_forward(state, params, *, tile_batch=4096):
    """state: (B, dim_state) f32. params: (in, out) weights + (1, out) biases."""
    B, dim_state = state.shape
    dim_action = params["w3"].shape[1]

    # Pad dim_action to 8 sublanes only (narrow output tail).
    N_pad = max(_round_up(dim_action, 8), 8)

    # Batch is the lane dimension -> tiles are multiples of 128.
    TB_cap = max(_round_up(tile_batch, 128), 128)
    TB_fit = _round_up(B, 128)
    # Prefer >= 2 grid steps when the batch is big enough (v7x megacore).
    TB_half = max(_round_up(pl.cdiv(B, 2), 128), 128) if B > 128 else TB_fit
    TB = min(TB_cap, TB_fit, TB_half)
    B_pad = _round_up(B, TB)
    num_tiles = B_pad // TB

    # Transposed, zero-padded input: (dim_state, B_pad). Tiny (12 B/row) op.
    state_t = jnp.zeros((dim_state, B_pad), jnp.float32)
    state_t = state_t.at[:, :B].set(state.astype(jnp.float32).T)

    # Weights stored transposed for the (features, batch) compute layout.
    w1_k = params["w1"].astype(jnp.float32).T                     # (32, S)
    b1_k = params["b1"].astype(jnp.float32).reshape(32, 1)
    w2_k = params["w2"].astype(jnp.float32).T                     # (128, 32)
    b2_k = params["b2"].astype(jnp.float32).reshape(128, 1)
    w3_k = jnp.zeros((N_pad, 128), jnp.float32).at[:dim_action, :].set(
        params["w3"].astype(jnp.float32).T)                       # (8, 128)
    b3_k = jnp.zeros((N_pad, 1), jnp.float32).at[:dim_action, :].set(
        params["b3"].astype(jnp.float32).reshape(dim_action, 1))

    # Weights/biases: full-array blocks, constant index_map -> VMEM-resident.
    def resident(a):
        return pl.BlockSpec(a.shape, lambda i: (0, 0))

    cost = pl.CostEstimate(
        flops=2 * B_pad * (dim_state * 32 + 32 * 128 + 128 * N_pad),
        transcendentals=B_pad * N_pad,
        bytes_accessed=(B_pad * dim_state * 4                    # state in
                        + B_pad * N_pad * 4                      # narrow out
                        + (dim_state * 32 + 32 * 128 + 128 * N_pad) * 4
                        + (32 + 128 + N_pad) * 4),               # biases
    )

    out_t = pl.pallas_call(
        policy_kernel,
        out_shape=jax.ShapeDtypeStruct((N_pad, B_pad), jnp.float32),
        grid=(num_tiles,),
        in_specs=[
            pl.BlockSpec((dim_state, TB), lambda i: (0, i)),      # streamed
            resident(w1_k), resident(b1_k),
            resident(w2_k), resident(b2_k),
            resident(w3_k), resident(b3_k),
        ],
        out_specs=pl.BlockSpec((N_pad, TB), lambda i: (0, i)),
        compiler_params=pltpu.CompilerParams(
            dimension_semantics=("parallel",)),
        cost_estimate=cost,
    )(state_t, w1_k, b1_k, w2_k, b2_k, w3_k, b3_k)

    # Only the real action rows / batch columns are touched here (tiny).
    return out_t[:dim_action, :B].T


def init_params(key, dim_state, dim_action, init_w=0.003):
    """Deterministic init mirroring PyTorch shapes (weights stored as (in, out))."""
    k1, k2, k3, k4, k5, k6 = jax.random.split(key, 6)

    def kaiming_uniform(k, fan_in, shape):
        bound = 1.0 / jnp.sqrt(fan_in)
        return jax.random.uniform(k, shape, jnp.float32, -bound, bound)

    return {
        "w1": kaiming_uniform(k1, dim_state, (dim_state, 32)),
        "b1": kaiming_uniform(k2, dim_state, (1, 32)),
        "w2": kaiming_uniform(k3, 32, (32, 128)),
        "b2": kaiming_uniform(k4, 32, (1, 128)),
        # linear3 uses uniform(-init_w, init_w) like the PyTorch module.
        "w3": jax.random.uniform(k5, (128, dim_action), jnp.float32,
                                 -init_w, init_w),
        "b3": jax.random.uniform(k6, (1, dim_action), jnp.float32,
                                 -init_w, init_w),
    }


def reference_forward(state, p):
    h1 = jnp.maximum(state @ p["w1"] + p["b1"], 0.0)
    h2 = jnp.maximum(h1 @ p["w2"] + p["b2"], 0.0)
    return jnp.tanh(h2 @ p["w3"] + p["b3"])


if __name__ == "__main__":
    # Pendulum-v1: dim_state=3, dim_action=1.
    # TODO(synk): gym environment / DDPG training loop are out of scope; only
    # the PolicyNetwork forward pass is kernelized.
    dim_state, dim_action = 3, 1

    key = jax.random.PRNGKey(0)
    k_params, k_small, k_big = jax.random.split(key, 3)
    params = init_params(k_params, dim_state, dim_action)

    # Small batch (spec shape).
    state = jax.random.normal(k_small, (2, dim_state), jnp.float32)
    out = jax.block_until_ready(policy_forward(state, params))
    ref = reference_forward(state, params)
    assert out.shape == (2, dim_action)
    assert jnp.allclose(out, ref, atol=1e-5, rtol=1e-5), (out, ref)

    # Larger, non-tile-multiple batch: exercises the multi-tile grid (2 steps)
    # and batch padding path.
    state_big = jax.random.normal(k_big, (300, dim_state), jnp.float32)
    out_big = jax.block_until_ready(policy_forward(state_big, params))
    ref_big = reference_forward(state_big, params)
    assert out_big.shape == (300, dim_action)
    assert jnp.allclose(out_big, ref_big, atol=1e-5, rtol=1e-5)

    print("KERNEL_OK")
</pallas_src>

<mosaic_0001>
module attributes {stable_mosaic.version = 11 : i64} {
  func.func @policy_kernel(%arg0: i32, %arg1: memref<3x128xf32, #tpu.memory_space<vmem>>, %arg2: memref<32x3xf32, #tpu.memory_space<vmem>>, %arg3: memref<32x1xf32, #tpu.memory_space<vmem>>, %arg4: memref<128x32xf32, #tpu.memory_space<vmem>>, %arg5: memref<128x1xf32, #tpu.memory_space<vmem>>, %arg6: memref<8x128xf32, #tpu.memory_space<vmem>>, %arg7: memref<8x1xf32, #tpu.memory_space<vmem>>, %arg8: memref<8x128xf32, #tpu.memory_space<vmem>>) attributes {dimension_semantics = [#tpu.dimension_semantics<parallel>], iteration_bounds = array<i64: 1>, scalar_prefetch = 0 : i64, scratch_operands = 0 : i64, tpu.core_type = #tpu.core_type<tc>, window_params = [{transform_indices = @transform_0, window_bounds = array<i64: 3, 128>}, {pipeline_mode = #tpu.pipeline_mode<synchronous>, transform_indices = @transform_1, window_bounds = array<i64: 32, 3>}, {pipeline_mode = #tpu.pipeline_mode<synchronous>, transform_indices = @transform_2, window_bounds = array<i64: 32, 1>}, {pipeline_mode = #tpu.pipeline_mode<synchronous>, transform_indices = @transform_3, window_bounds = array<i64: 128, 32>}, {pipeline_mode = #tpu.pipeline_mode<synchronous>, transform_indices = @transform_4, window_bounds = array<i64: 128, 1>}, {pipeline_mode = #tpu.pipeline_mode<synchronous>, transform_indices = @transform_5, window_bounds = array<i64: 8, 128>}, {pipeline_mode = #tpu.pipeline_mode<synchronous>, transform_indices = @transform_6, window_bounds = array<i64: 8, 1>}, {transform_indices = @transform_7, window_bounds = array<i64: 8, 128>}]} {
    %c0 = arith.constant 0 : index
    %c0_0 = arith.constant 0 : index
    %0 = vector.load %arg1[%c0, %c0_0] : memref<3x128xf32, #tpu.memory_space<vmem>>, vector<3x128xf32>
    %c0_1 = arith.constant 0 : index
    %c0_2 = arith.constant 0 : index
    %1 = vector.load %arg2[%c0_1, %c0_2] : memref<32x3xf32, #tpu.memory_space<vmem>>, vector<32x3xf32>
    %2 = vector.extract_strided_slice %1 {offsets = [0, 0], sizes = [32, 1], strides = [1, 1]} : vector<32x3xf32> to vector<32x1xf32>
    %3 = vector.extract_strided_slice %0 {offsets = [0, 0], sizes = [1, 128], strides = [1, 1]} : vector<3x128xf32> to vector<1x128xf32>
    %4 = vector.broadcast %2 : vector<32x1xf32> to vector<32x128xf32>
    %5 = vector.broadcast %3 : vector<1x128xf32> to vector<32x128xf32>
    %6 = arith.mulf %4, %5 : vector<32x128xf32>
    %7 = vector.extract_strided_slice %1 {offsets = [0, 1], sizes = [32, 1], strides = [1, 1]} : vector<32x3xf32> to vector<32x1xf32>
    %8 = vector.extract_strided_slice %0 {offsets = [1, 0], sizes = [1, 128], strides = [1, 1]} : vector<3x128xf32> to vector<1x128xf32>
    %9 = vector.broadcast %7 : vector<32x1xf32> to vector<32x128xf32>
    %10 = vector.broadcast %8 : vector<1x128xf32> to vector<32x128xf32>
    %11 = arith.mulf %9, %10 : vector<32x128xf32>
    %12 = arith.addf %6, %11 : vector<32x128xf32>
    %13 = vector.extract_strided_slice %1 {offsets = [0, 2], sizes = [32, 1], strides = [1, 1]} : vector<32x3xf32> to vector<32x1xf32>
    %14 = vector.extract_strided_slice %0 {offsets = [2, 0], sizes = [1, 128], strides = [1, 1]} : vector<3x128xf32> to vector<1x128xf32>
    %15 = vector.broadcast %13 : vector<32x1xf32> to vector<32x128xf32>
    %16 = vector.broadcast %14 : vector<1x128xf32> to vector<32x128xf32>
    %17 = arith.mulf %15, %16 : vector<32x128xf32>
    %18 = arith.addf %12, %17 : vector<32x128xf32>
    %c0_3 = arith.constant 0 : index
    %c0_4 = arith.constant 0 : index
    %19 = vector.load %arg3[%c0_3, %c0_4] : memref<32x1xf32, #tpu.memory_space<vmem>>, vector<32x1xf32>
    %20 = vector.broadcast %19 : vector<32x1xf32> to vector<32x128xf32>
    %21 = arith.addf %18, %20 : vector<32x128xf32>
    %cst = arith.constant 0.000000e+00 : f32
    %22 = vector.broadcast %cst : f32 to vector<32x128xf32>
    %23 = arith.maximumf %21, %22 : vector<32x128xf32>
    %c0_5 = arith.constant 0 : index
    %c0_6 = arith.constant 0 : index
    %24 = vector.load %arg4[%c0_5, %c0_6] : memref<128x32xf32, #tpu.memory_space<vmem>>, vector<128x32xf32>
    %cst_7 = arith.constant dense<0.000000e+00> : vector<128x128xf32>
    %25 = tpu.matmul %24, %23, %cst_7 {dimension_numbers = #tpu.dot_dimension_numbers<[1], [0], [0], [1], [0, 0, 1, 1], [], []>} : vector<128x32xf32>, vector<32x128xf32>, vector<128x128xf32> -> vector<128x128xf32>
    %c0_8 = arith.constant 0 : index
    %c0_9 = arith.constant 0 : index
    %26 = vector.load %arg5[%c0_8, %c0_9] : memref<128x1xf32, #tpu.memory_space<vmem>>, vector<128x1xf32>
    %27 = vector.broadcast %26 : vector<128x1xf32> to vector<128x128xf32>
    %28 = arith.addf %25, %27 : vector<128x128xf32>
    %cst_10 = arith.constant 0.000000e+00 : f32
    %29 = vector.broadcast %cst_10 : f32 to vector<128x128xf32>
    %30 = arith.maximumf %28, %29 : vector<128x128xf32>
    %c0_11 = arith.constant 0 : index
    %c0_12 = arith.constant 0 : index
    %31 = vector.load %arg6[%c0_11, %c0_12] : memref<8x128xf32, #tpu.memory_space<vmem>>, vector<8x128xf32>
    %cst_13 = arith.constant dense<0.000000e+00> : vector<8x128xf32>
    %32 = tpu.matmul %31, %30, %cst_13 {dimension_numbers = #tpu.dot_dimension_numbers<[1], [0], [0], [1], [0, 0, 1, 1], [], []>} : vector<8x128xf32>, vector<128x128xf32>, vector<8x128xf32> -> vector<8x128xf32>
    %c0_14 = arith.constant 0 : index
    %c0_15 = arith.constant 0 : index
    %33 = vector.load %arg7[%c0_14, %c0_15] : memref<8x1xf32, #tpu.memory_space<vmem>>, vector<8x1xf32>
    %34 = vector.broadcast %33 : vector<8x1xf32> to vector<8x128xf32>
    %35 = arith.addf %32, %34 : vector<8x128xf32>
    %36 = math.tanh %35 : vector<8x128xf32>
    %c0_16 = arith.constant 0 : index
    %c0_17 = arith.constant 0 : index
    %37 = vector.load %arg8[%c0_16, %c0_17] : memref<8x128xf32, #tpu.memory_space<vmem>>, vector<8x128xf32>
    tpu.vector_store %arg8[%c0_16, %c0_17], %36 {strides = array<i32>} : memref<8x128xf32, #tpu.memory_space<vmem>>, vector<8x128xf32>,
    return
  }
  func.func @transform_0(%arg0: i32) -> (i32, i32) {
    %c0_i32 = arith.constant 0 : i32
    %c0_i32_0 = arith.constant 0 : i32
    return %c0_i32, %arg0 : i32, i32
  }
  func.func @transform_1(%arg0: i32) -> (i32, i32) {
    %c0_i32 = arith.constant 0 : i32
    %c0_i32_0 = arith.constant 0 : i32
    %c0_i32_1 = arith.constant 0 : i32
    return %c0_i32, %c0_i32_0 : i32, i32
  }
  func.func @transform_2(%arg0: i32) -> (i32, i32) {
    %c0_i32 = arith.constant 0 : i32
    %c0_i32_0 = arith.constant 0 : i32
    %c0_i32_1 = arith.constant 0 : i32
    return %c0_i32, %c0_i32_0 : i32, i32
  }
  func.func @transform_3(%arg0: i32) -> (i32, i32) {
    %c0_i32 = arith.constant 0 : i32
    %c0_i32_0 = arith.constant 0 : i32
    %c0_i32_1 = arith.constant 0 : i32
    return %c0_i32, %c0_i32_0 : i32, i32
  }
  func.func @transform_4(%arg0: i32) -> (i32, i32) {
    %c0_i32 = arith.constant 0 : i32
    %c0_i32_0 = arith.constant 0 : i32
    %c0_i32_1 = arith.constant 0 : i32
    return %c0_i32, %c0_i32_0 : i32, i32
  }
  func.func @transform_5(%arg0: i32) -> (i32, i32) {
    %c0_i32 = arith.constant 0 : i32
    %c0_i32_0 = arith.constant 0 : i32
    %c0_i32_1 = arith.constant 0 : i32
    return %c0_i32, %c0_i32_0 : i32, i32
  }
  func.func @transform_6(%arg0: i32) -> (i32, i32) {
    %c0_i32 = arith.constant 0 : i32
    %c0_i32_0 = arith.constant 0 : i32
    %c0_i32_1 = arith.constant 0 : i32
    return %c0_i32, %c0_i32_0 : i32, i32
  }
  func.func @transform_7(%arg0: i32) -> (i32, i32) {
    %c0_i32 = arith.constant 0 : i32
    %c0_i32_0 = arith.constant 0 : i32
    return %c0_i32, %arg0 : i32, i32
  }
}

</mosaic_0001>

<llo_original>
// kernel: tpu_custom_call.1
$region0: #{tpu_custom_call.1}
  #allocation0 [shape = 'u32[]', space=smem, size = 0x4, offset = 0x4, fixed_abs, tag = 'smem constant byte address 0x4 - core index']
  #allocation1 [shape = 'u32[144,128]{1,0:T(1,128)}', space=vmem, size = 0x12000, scoped, tag = 'internal scratch']
  %s0 = inlined_call_operand.vmem [shape: f32[3,128], index: 0, kind: input, shape index: {}]
  %s1 = inlined_call_operand.vmem [shape: f32[32,3], index: 1, kind: input, shape index: {}]
  %s2 = inlined_call_operand.vmem [shape: f32[32,1], index: 2, kind: input, shape index: {}]
  %s3 = inlined_call_operand.vmem [shape: f32[128,32], index: 3, kind: input, shape index: {}]
  %s4 = inlined_call_operand.vmem [shape: f32[128,1], index: 4, kind: input, shape index: {}]
  %s5 = inlined_call_operand.vmem [shape: f32[8,128], index: 5, kind: input, shape index: {}]
  %s6 = inlined_call_operand.vmem [shape: f32[8,1], index: 6, kind: input, shape index: {}]
  %s7 = inlined_call_operand.hbm [shape: f32[8,128], index: 7, kind: output, shape index: {}]
  %s8 = sld [smem:[#allocation0]]
  $region38: #{tpu_custom_call.1} parent=0
    _
  %s10 = ssub.s32 1, %s8
  %s11 = scalar_select 0, %s10, %s8
  $region1: #{tpu_custom_call.1} parent=0
    #allocation2 [shape = 'u8[4096]{0}', space=vmem, size = 0x1000, scoped, tag = 'output window, operand 0, single buffered']
    #allocation3 [shape = 's32[1]{0}', space=sflag, size = 0x4, scoped, tag = 'scoped memory for tpu_custom_call.1']
    %12 = vsyncpa [#allocation3], 0
    // Predicated region
    $region2: #{tpu_custom_call.1} parent=1 // pred_check
      _
    $region3: #{tpu_custom_call.1} parent=1 // pred_check_branch
      %14 = sbr.rel (0) target = $region5
    $region4: #{tpu_custom_call.1} parent=1 // pred_region
      _
    $region5: #{tpu_custom_call.1} parent=1 // pred_fallthru
      _
    // Predicated region
    $region6: #{tpu_custom_call.1} parent=1 // pred_check
      _
    $region7: #{tpu_custom_call.1} parent=1 // pred_check_branch
      %16 = sbr.rel (0) target = $region9
    $region8: #{tpu_custom_call.1} parent=1 // pred_region
      _
    $region9: #{tpu_custom_call.1} parent=1 // pred_fallthru
      _
    // Predicated region
    $region10: #{tpu_custom_call.1} parent=1 // pred_check
      _
    $region11: #{tpu_custom_call.1} parent=1 // pred_check_branch
      %18 = sbr.rel (0) target = $region13
    $region12: #{tpu_custom_call.1} parent=1 // pred_region
      _
    $region13: #{tpu_custom_call.1} parent=1 // pred_fallthru
      _
    // Predicated region
    $region14: #{tpu_custom_call.1} parent=1 // pred_check
      _
    $region15: #{tpu_custom_call.1} parent=1 // pred_check_branch
      %20 = sbr.rel (0) target = $region17
    $region16: #{tpu_custom_call.1} parent=1 // pred_region
      _
    $region17: #{tpu_custom_call.1} parent=1 // pred_fallthru
      _
    // Predicated region
    $region18: #{tpu_custom_call.1} parent=1 // pred_check
      _
    $region19: #{tpu_custom_call.1} parent=1 // pred_check_branch
      %22 = sbr.rel (0) target = $region21
    $region20: #{tpu_custom_call.1} parent=1 // pred_region
      _
    $region21: #{tpu_custom_call.1} parent=1 // pred_fallthru
      _
    // Predicated region
    $region22: #{tpu_custom_call.1} parent=1 // pred_check
      _
    $region23: #{tpu_custom_call.1} parent=1 // pred_check_branch
      %24 = sbr.rel (0) target = $region25
    $region24: #{tpu_custom_call.1} parent=1 // pred_region
      _
    $region25: #{tpu_custom_call.1} parent=1 // pred_fallthru
      _
    // Predicated region
    $region26: #{tpu_custom_call.1} parent=1 // pred_check
      _
    $region27: #{tpu_custom_call.1} parent=1 // pred_check_branch
      %26 = sbr.rel (0) target = $region29
    $region28: #{tpu_custom_call.1} parent=1 // pred_region
      _
    $region29: #{tpu_custom_call.1} parent=1 // pred_fallthru
      _
    %v27 = vld [vmem:[%s0] sm:$0x7]
    %v28 = vld [vmem:[%s1] sm:$0xff]
    %v29 = vld [vmem:[%s1 + $0x8] sm:$0xff]
    %v30 = vld [vmem:[%s1 + $0x10] sm:$0xff]
    %v31 = vld [vmem:[%s1 + $0x18] sm:$0xff]
    %33 = vset.pattern.permute.xlu0 0
    %34 = vperm.xlu0 %33, %v28
    %v35 = vpop.permute.xlu0 %34
    %38 = vset.pattern.permute.xlu0 0
    %39 = vperm.xlu0 %38, %v29
    %v40 = vpop.permute.xlu0 %39
    %43 = vset.pattern.permute.xlu0 0
    %44 = vperm.xlu0 %43, %v30
    %v45 = vpop.permute.xlu0 %44
    %48 = vset.pattern.permute.xlu0 0
    %49 = vperm.xlu0 %48, %v31
    %v50 = vpop.permute.xlu0 %49
    %v52 = vlaneseq
    %v53 = vshrl.u32 %v52, 7
    %v54 = vsub.s32 0, %v53
    %v55 = vrot.slane %v27, %v54
    %v56 = vmul.f32 %v35, %v55
    %v57 = vmul.f32 %v40, %v55
    %v58 = vmul.f32 %v45, %v55
    %v59 = vmul.f32 %v50, %v55
    %60 = vset.pattern.permute.xlu0 1
    %61 = vperm.xlu0 %60, %v28
    %v62 = vpop.permute.xlu0 %61
    %64 = vset.pattern.permute.xlu0 1
    %65 = vperm.xlu0 %64, %v29
    %v66 = vpop.permute.xlu0 %65
    %68 = vset.pattern.permute.xlu0 1
    %69 = vperm.xlu0 %68, %v30
    %v70 = vpop.permute.xlu0 %69
    %72 = vset.pattern.permute.xlu0 1
    %73 = vperm.xlu0 %72, %v31
    %v74 = vpop.permute.xlu0 %73
    %v76 = vlaneseq
    %v77 = vshrl.u32 %v76, 7
    %v78 = vsub.s32 1, %v77
    %v79 = vrot.slane %v27, %v78
    %v80 = vmul.f32 %v62, %v79
    %v81 = vmul.f32 %v66, %v79
    %v82 = vmul.f32 %v70, %v79
    %v83 = vmul.f32 %v74, %v79
    %v84 = vadd.f32 %v56, %v80
    %v85 = vadd.f32 %v57, %v81
    %v86 = vadd.f32 %v58, %v82
    %v87 = vadd.f32 %v59, %v83
    %88 = vset.pattern.permute.xlu0 2
    %89 = vperm.xlu0 %88, %v28
    %v90 = vpop.permute.xlu0 %89
    %92 = vset.pattern.permute.xlu0 2
    %93 = vperm.xlu0 %92, %v29
    %v94 = vpop.permute.xlu0 %93
    %96 = vset.pattern.permute.xlu0 2
    %97 = vperm.xlu0 %96, %v30
    %v98 = vpop.permute.xlu0 %97
    %100 = vset.pattern.permute.xlu0 2
    %101 = vperm.xlu0 %100, %v31
    %v102 = vpop.permute.xlu0 %101
    %v104 = vlaneseq
    %v105 = vshrl.u32 %v104, 7
    %v106 = vsub.s32 2, %v105
    %v107 = vrot.slane %v27, %v106
    %v108 = vmul.f32 %v90, %v107
    %v109 = vmul.f32 %v94, %v107
    %v110 = vmul.f32 %v98, %v107
    %v111 = vmul.f32 %v102, %v107
    %v112 = vadd.f32 %v84, %v108
    %v113 = vadd.f32 %v85, %v109
    %v114 = vadd.f32 %v86, %v110
    %v115 = vadd.f32 %v87, %v111
    %v116 = vld [vmem:[%s2] sm:$0xff]
    %v117 = vld [vmem:[%s2 + $0x8] sm:$0xff]
    %v118 = vld [vmem:[%s2 + $0x10] sm:$0xff]
    %v119 = vld [vmem:[%s2 + $0x18] sm:$0xff]
    %121 = vset.pattern.permute.xlu0 0
    %122 = vperm.xlu0 %121, %v116
    %v123 = vpop.permute.xlu0 %122
    %126 = vset.pattern.permute.xlu0 0
    %127 = vperm.xlu0 %126, %v117
    %v128 = vpop.permute.xlu0 %127
    %131 = vset.pattern.permute.xlu0 0
    %132 = vperm.xlu0 %131, %v118
    %v133 = vpop.permute.xlu0 %132
    %136 = vset.pattern.permute.xlu0 0
    %137 = vperm.xlu0 %136, %v119
    %v138 = vpop.permute.xlu0 %137
    %v140 = vadd.f32 %v112, %v123
    %v141 = vadd.f32 %v113, %v128
    %v142 = vadd.f32 %v114, %v133
    %v143 = vadd.f32 %v115, %v138
    %v144 = vmax.f32 %v140, 0.0
    %v145 = vmax.f32 %v141, 0.0
    %v146 = vmax.f32 %v142, 0.0
    %v147 = vmax.f32 %v143, 0.0
    %v148 = vld [vmem:[%s3] sm:$0xff]
    %v149 = vld [vmem:[%s3 + $0x8] sm:$0xff]
    %v150 = vld [vmem:[%s3 + $0x10] sm:$0xff]
    %v151 = vld [vmem:[%s3 + $0x18] sm:$0xff]
    %v152 = vld [vmem:[%s3 + $0x20] sm:$0xff]
    %v153 = vld [vmem:[%s3 + $0x28] sm:$0xff]
    %v154 = vld [vmem:[%s3 + $0x30] sm:$0xff]
    %v155 = vld [vmem:[%s3 + $0x38] sm:$0xff]
    %v156 = vld [vmem:[%s3 + $0x40] sm:$0xff]
    %v157 = vld [vmem:[%s3 + $0x48] sm:$0xff]
    %v158 = vld [vmem:[%s3 + $0x50] sm:$0xff]
    %v159 = vld [vmem:[%s3 + $0x58] sm:$0xff]
    %v160 = vld [vmem:[%s3 + $0x60] sm:$0xff]
    %v161 = vld [vmem:[%s3 + $0x68] sm:$0xff]
    %v162 = vld [vmem:[%s3 + $0x70] sm:$0xff]
    %v163 = vld [vmem:[%s3 + $0x78] sm:$0xff]
    %v164 = vld [vmem:[%s4] sm:$0xff]
    %v165 = vld [vmem:[%s4 + $0x8] sm:$0xff]
    %v166 = vld [vmem:[%s4 + $0x10] sm:$0xff]
    %v167 = vld [vmem:[%s4 + $0x18] sm:$0xff]
    %v168 = vld [vmem:[%s4 + $0x20] sm:$0xff]
    %v169 = vld [vmem:[%s4 + $0x28] sm:$0xff]
    %v170 = vld [vmem:[%s4 + $0x30] sm:$0xff]
    %v171 = vld [vmem:[%s4 + $0x38] sm:$0xff]
    %v172 = vld [vmem:[%s4 + $0x40] sm:$0xff]
    %v173 = vld [vmem:[%s4 + $0x48] sm:$0xff]
    %v174 = vld [vmem:[%s4 + $0x50] sm:$0xff]
    %v175 = vld [vmem:[%s4 + $0x58] sm:$0xff]
    %v176 = vld [vmem:[%s4 + $0x60] sm:$0xff]
    %v177 = vld [vmem:[%s4 + $0x68] sm:$0xff]
    %v178 = vld [vmem:[%s4 + $0x70] sm:$0xff]
    %v179 = vld [vmem:[%s4 + $0x78] sm:$0xff]
    %181 = vset.pattern.permute.xlu0 0
    %182 = vperm.xlu0 %181, %v164
    %v183 = vpop.permute.xlu0 %182
    %186 = vset.pattern.permute.xlu0 0
    %187 = vperm.xlu0 %186, %v165
    %v188 = vpop.permute.xlu0 %187
    %191 = vset.pattern.permute.xlu0 0
    %192 = vperm.xlu0 %191, %v166
    %v193 = vpop.permute.xlu0 %192
    %196 = vset.pattern.permute.xlu0 0
    %197 = vperm.xlu0 %196, %v167
    %v198 = vpop.permute.xlu0 %197
    %201 = vset.pattern.permute.xlu0 0
    %202 = vperm.xlu0 %201, %v168
    %v203 = vpop.permute.xlu0 %202
    %206 = vset.pattern.permute.xlu0 0
    %207 = vperm.xlu0 %206, %v169
    %v208 = vpop.permute.xlu0 %207
    %211 = vset.pattern.permute.xlu0 0
    %212 = vperm.xlu0 %211, %v170
    %v213 = vpop.permute.xlu0 %212
    %216 = vset.pattern.permute.xlu0 0
    %217 = vperm.xlu0 %216, %v171
    %v218 = vpop.permute.xlu0 %217
    %221 = vset.pattern.permute.xlu0 0
    %222 = vperm.xlu0 %221, %v172
    %v223 = vpop.permute.xlu0 %222
    %226 = vset.pattern.permute.xlu0 0
    %227 = vperm.xlu0 %226, %v173
    %v228 = vpop.permute.xlu0 %227
    %231 = vset.pattern.permute.xlu0 0
    %232 = vperm.xlu0 %231, %v174
    %v233 = vpop.permute.xlu0 %232
    %236 = vset.pattern.permute.xlu0 0
    %237 = vperm.xlu0 %236, %v175
    %v238 = vpop.permute.xlu0 %237
    %241 = vset.pattern.permute.xlu0 0
    %242 = vperm.xlu0 %241, %v176
    %v243 = vpop.permute.xlu0 %242
    %246 = vset.pattern.permute.xlu0 0
    %247 = vperm.xlu0 %246, %v177
    %v248 = vpop.permute.xlu0 %247
    %251 = vset.pattern.permute.xlu0 0
    %252 = vperm.xlu0 %251, %v178
    %v253 = vpop.permute.xlu0 %252
    %256 = vset.pattern.permute.xlu0 0
    %257 = vperm.xlu0 %256, %v179
    %v258 = vpop.permute.xlu0 %257
    %vm260 = vcmask 261120
    %v262 = vsel %vm260, %v148, 0
    %v265 = vsel %vm260, %v149, 0
    %v268 = vsel %vm260, %v150, 0
    %v271 = vsel %vm260, %v151, 0
    %v274 = vsel %vm260, %v152, 0
    %v277 = vsel %vm260, %v153, 0
    %v280 = vsel %vm260, %v154, 0
    %v283 = vsel %vm260, %v155, 0
    %v286 = vsel %vm260, %v156, 0
    %v289 = vsel %vm260, %v157, 0
    %v292 = vsel %vm260, %v158, 0
    %v295 = vsel %vm260, %v159, 0
    %v298 = vsel %vm260, %v160, 0
    %v301 = vsel %vm260, %v161, 0
    %v304 = vsel %vm260, %v162, 0
    %v307 = vsel %vm260, %v163, 0
    %309 = vmatprep.subr.mxu0 0.0
    %310 = vmatpush1.msra.mxu0 %v144
    %311 = vmatprep.subr.mxu0 0.0
    %312 = vmatpush1.msra.mxu0 %v145
    %313 = vmatprep.subr.mxu0 0.0
    %314 = vmatpush1.msra.mxu0 %v146
    %315 = vmatprep.subr.mxu0 0.0
    %316 = vmatpush1.msra.mxu0 %v147
    %317 = vmatprep.subr.mxu0 0.0
    %318 = vmatpush1.msra.mxu0 0.0
    %319 = vmatprep.subr.mxu0 0.0
    %320 = vmatpush1.msra.mxu0 0.0
    %321 = vmatprep.subr.mxu0 0.0
    %322 = vmatpush1.msra.mxu0 0.0
    %323 = vmatprep.subr.mxu0 0.0
    %324 = vmatpush1.msra.mxu0 0.0
    %325 = vmatprep.subr.mxu0 0.0
    %326 = vmatpush1.msra.mxu0 0.0
    %327 = vmatprep.subr.mxu0 0.0
    %328 = vmatpush1.msra.mxu0 0.0
    %329 = vmatprep.subr.mxu0 0.0
    %330 = vmatpush1.msra.mxu0 0.0
    %331 = vmatprep.subr.mxu0 0.0
    %332 = vmatpush1.msra.mxu0 0.0
    %333 = vmatprep.subr.mxu0 0.0
    %334 = vmatpush1.msra.mxu0 0.0
    %335 = vmatprep.subr.mxu0 0.0
    %336 = vmatpush1.msra.mxu0 0.0
    %337 = vmatprep.subr.mxu0 0.0
    %338 = vmatpush1.msra.mxu0 0.0
    %339 = vmatprep.subr.mxu0 0.0
    %340 = vmatpush1.msra.mxu0 0.0
    %341 = vmatprep.subr.mxu0 0.0
    %342 = vmatpush1.msra.mxu0 0.0
    %343 = vmatprep.subr.mxu0 0.0
    %344 = vmatpush1.msra.mxu0 0.0
    %345 = vmatprep.subr.mxu0 0.0
    %346 = vmatpush1.msra.mxu0 0.0
    %347 = vmatprep.subr.mxu0 0.0
    %348 = vmatpush1.msra.mxu0 0.0
    %349 = vmatprep.subr.mxu0 0.0
    %350 = vmatpush1.msra.mxu0 0.0
    %351 = vmatprep.subr.mxu0 0.0
    %352 = vmatpush1.msra.mxu0 0.0
    %353 = vmatprep.subr.mxu0 0.0
    %354 = vmatpush1.msra.mxu0 0.0
    %355 = vmatprep.subr.mxu0 0.0
    %356 = vmatpush1.msra.mxu0 0.0
    %357 = vmatprep.subr.mxu0 0.0
    %358 = vmatpush1.msra.mxu0 0.0
    %359 = vmatprep.subr.mxu0 0.0
    %360 = vmatpush1.msra.mxu0 0.0
    %361 = vmatprep.subr.mxu0 0.0
    %362 = vmatpush1.msra.mxu0 0.0
    %363 = vmatprep.subr.mxu0 0.0
    %364 = vmatpush1.msra.mxu0 0.0
    %365 = vmatprep.subr.mxu0 0.0
    %366 = vmatpush1.msra.mxu0 0.0
    %367 = vmatprep.subr.mxu0 0.0
    %368 = vmatpush1.msra.mxu0 0.0
    %369 = vmatprep.subr.mxu0 0.0
    %370 = vmatpush1.msra.mxu0 0.0
    %371 = vmatprep.subr.mxu0 0.0
    %372 = vmatpush1.msra.mxu0 0.0
    %373 = vmatprep.mubr.f32.mxu0 0.0
    %374 = vmatmul.mubr.f32.gmra.mrb[0].mxu0 %v262
    %v375 = vpop.f32.mrb[0].mxu0
    %v376 = vadd.f32 %v183, %v375
    %v377 = vpop.f32.mrb[0].mxu0
    %378 = vmatprep.mubr.f32.mxu0 0.0
    %379 = vmatmul.mubr.f32.gmra.mrb[0].mxu0 %v265
    %v380 = vpop.f32.mrb[0].mxu0
    %v381 = vadd.f32 %v188, %v380
    %v382 = vpop.f32.mrb[0].mxu0
    %383 = vmatprep.mubr.f32.mxu0 0.0
    %384 = vmatmul.mubr.f32.gmra.mrb[0].mxu0 %v268
    %v385 = vpop.f32.mrb[0].mxu0
    %v386 = vadd.f32 %v193, %v385
    %v387 = vpop.f32.mrb[0].mxu0
    %388 = vmatprep.mubr.f32.mxu0 0.0
    %389 = vmatmul.mubr.f32.gmra.mrb[0].mxu0 %v271
    %v390 = vpop.f32.mrb[0].mxu0
    %v391 = vadd.f32 %v198, %v390
    %v392 = vpop.f32.mrb[0].mxu0
    %393 = vmatprep.mubr.f32.mxu0 0.0
    %394 = vmatmul.mubr.f32.gmra.mrb[0].mxu0 %v274
    %v395 = vpop.f32.mrb[0].mxu0
    %v396 = vadd.f32 %v203, %v395
    %v397 = vpop.f32.mrb[0].mxu0
    %398 = vmatprep.mubr.f32.mxu0 0.0
    %399 = vmatmul.mubr.f32.gmra.mrb[0].mxu0 %v277
    %v400 = vpop.f32.mrb[0].mxu0
    %v401 = vadd.f32 %v208, %v400
    %v402 = vpop.f32.mrb[0].mxu0
    %403 = vmatprep.mubr.f32.mxu0 0.0
    %404 = vmatmul.mubr.f32.gmra.mrb[0].mxu0 %v280
    %v405 = vpop.f32.mrb[0].mxu0
    %v406 = vadd.f32 %v213, %v405
    %v407 = vpop.f32.mrb[0].mxu0
    %408 = vmatprep.mubr.f32.mxu0 0.0
    %409 = vmatmul.mubr.f32.gmra.mrb[0].mxu0 %v283
    %v410 = vpop.f32.mrb[0].mxu0
    %v411 = vadd.f32 %v218, %v410
    %v412 = vpop.f32.mrb[0].mxu0
    %413 = vmatprep.mubr.f32.mxu0 0.0
    %414 = vmatmul.mubr.f32.gmra.mrb[0].mxu0 %v286
    %v415 = vpop.f32.mrb[0].mxu0
    %v416 = vadd.f32 %v223, %v415
    %v417 = vpop.f32.mrb[0].mxu0
    %418 = vmatprep.mubr.f32.mxu0 0.0
    %419 = vmatmul.mubr.f32.gmra.mrb[0].mxu0 %v289
    %v420 = vpop.f32.mrb[0].mxu0
    %v421 = vadd.f32 %v228, %v420
    %v422 = vpop.f32.mrb[0].mxu0
    %423 = vmatprep.mubr.f32.mxu0 0.0
    %424 = vmatmul.mubr.f32.gmra.mrb[0].mxu0 %v292
    %v425 = vpop.f32.mrb[0].mxu0
    %v426 = vadd.f32 %v233, %v425
    %v427 = vpop.f32.mrb[0].mxu0
    %428 = vmatprep.mubr.f32.mxu0 0.0
    %429 = vmatmul.mubr.f32.gmra.mrb[0].mxu0 %v295
    %v430 = vpop.f32.mrb[0].mxu0
    %v431 = vadd.f32 %v238, %v430
    %v432 = vpop.f32.mrb[0].mxu0
    %433 = vmatprep.mubr.f32.mxu0 0.0
    %434 = vmatmul.mubr.f32.gmra.mrb[0].mxu0 %v298
    %v435 = vpop.f32.mrb[0].mxu0
    %v436 = vadd.f32 %v243, %v435
    %v437 = vpop.f32.mrb[0].mxu0
    %438 = vmatprep.mubr.f32.mxu0 0.0
    %439 = vmatmul.mubr.f32.gmra.mrb[0].mxu0 %v301
    %v440 = vpop.f32.mrb[0].mxu0
    %v441 = vadd.f32 %v248, %v440
    %v442 = vpop.f32.mrb[0].mxu0
    %443 = vmatprep.mubr.f32.mxu0 0.0
    %444 = vmatmul.mubr.f32.gmra.mrb[0].mxu0 %v304
    %v445 = vpop.f32.mrb[0].mxu0
    %v446 = vadd.f32 %v253, %v445
    %v447 = vpop.f32.mrb[0].mxu0
    %448 = vmatprep.mubr.f32.mxu0 0.0
    %449 = vmatmul.mubr.f32.gmra.mrb[0].mxu0 %v307
    %v450 = vpop.f32.mrb[0].mxu0
    %v451 = vadd.f32 %v258, %v450
    %v452 = vpop.f32.mrb[0].mxu0
    %453 = vdwg.mxu0
    %v454 = vmax.f32 %v376, 0.0
    %v455 = vmax.f32 %v381, 0.0
    %v456 = vmax.f32 %v386, 0.0
    %v457 = vmax.f32 %v391, 0.0
    %v458 = vmax.f32 %v396, 0.0
    %v459 = vmax.f32 %v401, 0.0
    %v460 = vmax.f32 %v406, 0.0
    %v461 = vmax.f32 %v411, 0.0
    %v462 = vmax.f32 %v416, 0.0
    %v463 = vmax.f32 %v421, 0.0
    %v464 = vmax.f32 %v426, 0.0
    %v465 = vmax.f32 %v431, 0.0
    %v466 = vmax.f32 %v436, 0.0
    %v467 = vmax.f32 %v441, 0.0
    %v468 = vmax.f32 %v446, 0.0
    %v469 = vmax.f32 %v451, 0.0
    %v470 = vld [vmem:[%s5] sm:$0xff]
    %v471 = vld [vmem:[%s6] sm:$0xff]
    %473 = vset.pattern.permute.xlu0 0
    %474 = vperm.xlu0 %473, %v471
    %v475 = vpop.permute.xlu0 %474
    %477 = vmatprep.subr.mxu0 0.0
    %478 = vmatpush1.msra.mxu0 %v454
    %479 = vmatprep.subr.mxu0 0.0
    %480 = vmatpush1.msra.mxu0 %v455
    %481 = vmatprep.subr.mxu0 0.0
    %482 = vmatpush1.msra.mxu0 %v456
    %483 = vmatprep.subr.mxu0 0.0
    %484 = vmatpush1.msra.mxu0 %v457
    %485 = vmatprep.subr.mxu0 0.0
    %486 = vmatpush1.msra.mxu0 %v458
    %487 = vmatprep.subr.mxu0 0.0
    %488 = vmatpush1.msra.mxu0 %v459
    %489 = vmatprep.subr.mxu0 0.0
    %490 = vmatpush1.msra.mxu0 %v460
    %491 = vmatprep.subr.mxu0 0.0
    %492 = vmatpush1.msra.mxu0 %v461
    %493 = vmatprep.subr.mxu0 0.0
    %494 = vmatpush1.msra.mxu0 %v462
    %495 = vmatprep.subr.mxu0 0.0
    %496 = vmatpush1.msra.mxu0 %v463
    %497 = vmatprep.subr.mxu0 0.0
    %498 = vmatpush1.msra.mxu0 %v464
    %499 = vmatprep.subr.mxu0 0.0
    %500 = vmatpush1.msra.mxu0 %v465
    %501 = vmatprep.subr.mxu0 0.0
    %502 = vmatpush1.msra.mxu0 %v466
    %503 = vmatprep.subr.mxu0 0.0
    %504 = vmatpush1.msra.mxu0 %v467
    %505 = vmatprep.subr.mxu0 0.0
    %506 = vmatpush1.msra.mxu0 %v468
    %507 = vmatprep.subr.mxu0 0.0
    %508 = vmatpush1.msra.mxu0 %v469
    %509 = vmatprep.subr.mxu0 0.0
    %510 = vmatpush1.msra.mxu0 0.0
    %511 = vmatprep.subr.mxu0 0.0
    %512 = vmatpush1.msra.mxu0 0.0
    %513 = vmatprep.subr.mxu0 0.0
    %514 = vmatpush1.msra.mxu0 0.0
    %515 = vmatprep.subr.mxu0 0.0
    %516 = vmatpush1.msra.mxu0 0.0
    %517 = vmatprep.subr.mxu0 0.0
    %518 = vmatpush1.msra.mxu0 0.0
    %519 = vmatprep.subr.mxu0 0.0
    %520 = vmatpush1.msra.mxu0 0.0
    %521 = vmatprep.subr.mxu0 0.0
    %522 = vmatpush1.msra.mxu0 0.0
    %523 = vmatprep.subr.mxu0 0.0
    %524 = vmatpush1.msra.mxu0 0.0
    %525 = vmatprep.subr.mxu0 0.0
    %526 = vmatpush1.msra.mxu0 0.0
    %527 = vmatprep.subr.mxu0 0.0
    %528 = vmatpush1.msra.mxu0 0.0
    %529 = vmatprep.subr.mxu0 0.0
    %530 = vmatpush1.msra.mxu0 0.0
    %531 = vmatprep.subr.mxu0 0.0
    %532 = vmatpush1.msra.mxu0 0.0
    %533 = vmatprep.subr.mxu0 0.0
    %534 = vmatpush1.msra.mxu0 0.0
    %535 = vmatprep.subr.mxu0 0.0
    %536 = vmatpush1.msra.mxu0 0.0
    %537 = vmatprep.subr.mxu0 0.0
    %538 = vmatpush1.msra.mxu0 0.0
    %539 = vmatprep.subr.mxu0 0.0
    %540 = vmatpush1.msra.mxu0 0.0
    %541 = vmatprep.mubr.f32.mxu0 0.0
    %542 = vmatmul.mubr.f32.gmra.mrb[0].mxu0 %v470
    %v543 = vpop.f32.mrb[0].mxu0
    %v544 = vadd.f32 %v475, %v543
    %v545 = vpop.f32.mrb[0].mxu0
    %546 = vdwg.mxu0
    %v547 = vtanh.pop %v544
    %548 = vst [vmem:[#allocation2] sm:$0xff] %v547
    // Predicated region
    $region30: #{tpu_custom_call.1} parent=1 // pred_check
      _
    $region31: #{tpu_custom_call.1} parent=1 // pred_check_branch
      %550 = sbr.rel (0) target = $region33
    $region32: #{tpu_custom_call.1} parent=1 // pred_region
      %s552 = ssub.s32 128, 128
      %553 = vsyncadd [#allocation3], %s552
      %s555 = sshll.u32 [#allocation2], 4
      %s556 = int_to_ptr.vmem [resolvable:$true] %s555
      %558 = dma.vmem_to_hbm [thread:$0]  %s556, 128, %s7, [#allocation3]
    $region33: #{tpu_custom_call.1} parent=1 // pred_fallthru
      _
    // Predicated region
    $region34: #{tpu_custom_call.1} parent=1 // pred_check
      _
    $region35: #{tpu_custom_call.1} parent=1 // pred_check_branch
      %560 = sbr.rel (0) target = $region37
    $region36: #{tpu_custom_call.1} parent=1 // pred_region
      %561 = dma.done [#allocation3], 128
    $region37: #{tpu_custom_call.1} parent=1 // pred_fallthru
      _
    %562 = vsyncpa [#allocation3], 1

</llo_original>
